<compile_context>
chip_gen: v6e
topology: v6e:2x2x1
jax: 0.10.0
libtpu: 0.0.40
codegen_flags: <defaults>
</compile_context>

<pallas_src>
import math

import jax
import jax.numpy as jnp
from jax.experimental import pallas as pl
from jax.experimental.pallas import tpu as pltpu


def _round_up(x: int, m: int) -> int:
    return ((x + m - 1) // m) * m


def _fold_factor(d: int, rows: int) -> int:
    """How many consecutive logical rows to fold into the lane axis.

    Picks the smallest g with (g * 2 * d) % 128 == 0 (lane-dense output slab),
    preferring a g that also makes g*d a multiple of 128 (lane-dense x reads).
    Folding is only applied when it is a clean view of the row axis.
    """
    g_out = 128 // math.gcd(2 * d, 128)   # lane-dense output rows
    g_in = 128 // math.gcd(d, 128)        # additionally lane-dense x reads
    for g in (g_in, g_out):
        if 1 < g <= 32 and rows % g == 0:
            return g
    return 1


def _make_interleave_kernel(d: int, yd: int, fold: int):
    """Kernel over blocks  x:(T, fold*d)  y:(T, fold*yd)  o:(T, fold*2*d)."""

    def kernel(x_ref, y_ref, o_ref):
        t = x_ref.shape[0]
        dt = o_ref.dtype

        # Hoisted constants (JAX does not CSE broadcast_in_dim in the
        # unrolled loop below). These are VPU filler in a DMA-bound kernel.
        merge_y = (yd == 1) and (d > 1)
        if merge_y:
            lane = jax.lax.broadcasted_iota(jnp.int32, (t, d), 1)
            y_keep = lane == 0
            zeros_d = jnp.zeros((t, d), dtype=dt)
        elif yd < d:
            zpad = jnp.zeros((t, d - yd), dtype=dt)

        for g in range(fold):  # static unroll; fold <= 32
            base = g * 2 * d
            # x occupies the first d lanes of this logical row.
            o_ref[:, base:base + d] = x_ref[:, g * d:(g + 1) * d].astype(dt)
            if merge_y:
                # Single width-d store for y + its zero padding (y_dim == 1).
                yg = y_ref[:, g:g + 1].astype(dt)            # (t, 1) broadcast
                o_ref[:, base + d:base + 2 * d] = jnp.where(y_keep, yg, zeros_d)
            else:
                o_ref[:, base + d:base + d + yd] = (
                    y_ref[:, g * yd:(g + 1) * yd].astype(dt))
                if yd < d:
                    o_ref[:, base + d + yd:base + 2 * d] = zpad

    return kernel


def interleave_pallas(xs: jax.Array, ys: jax.Array, *,
                      force_pallas: bool = False) -> jax.Array:
    """Pallas version of ContextModel.interleave. Returns (B, 2*S, x_dim)."""
    b, s, d = xs.shape
    yb, ss, yd = ys.shape
    assert yb == b and ss == s and 1 <= yd <= d

    # Match torch's type promotion (cat/stack promote to a common dtype).
    out_dtype = jnp.result_type(xs.dtype, ys.dtype)
    itemsize = jnp.dtype(out_dtype).itemsize
    rows = b * s

    # Small-problem fallback: fixed pallas_call/DMA-setup cost dominates for
    # tiny inputs; fused XLA pad+stack already hits roofline there.
    if (not force_pallas) and rows * 2 * d * itemsize < (1 << 20):
        xs_c = xs.astype(out_dtype)
        ys_c = ys.astype(out_dtype)
        if yd < d:
            ys_c = jnp.concatenate(
                [ys_c, jnp.zeros((b, s, d - yd), dtype=out_dtype)], axis=-1)
        return jnp.stack([xs_c, ys_c], axis=2).reshape(b, 2 * s, d)

    # Fold consecutive rows into lanes for a lane-dense output slab.
    fold = _fold_factor(d, rows)
    folded_rows = rows // fold

    xs2d = xs.reshape(folded_rows, fold * d)      # free row-major views
    ys2d = ys.reshape(folded_rows, fold * yd)

    # dtype-native sublane multiple: 8 (f32) / 16 (bf16) / 32 (int8, fp8).
    sub = max(8, 32 // itemsize)

    # Tile sizing: big tiles to amortize per-step overhead, but keep the
    # double-buffered (x + y + out) working set well under v7x's 64 MiB VMEM.
    step_row_bytes = fold * (d + yd + 2 * d) * itemsize
    max_step_bytes = 12 * 1024 * 1024
    rows_cap = max(sub, (max_step_bytes // max(1, step_row_bytes)) // sub * sub)
    tile_rows = min(rows_cap, 16384)

    if folded_rows <= tile_rows:
        # Single full-extent block (legal for any shape).
        tile_rows = folded_rows
    else:
        # Keep >= ~8 grid steps so the software pipeline overlaps DMA and the
        # "parallel" axis gives each v7x TensorCore several steps.
        min_steps = 8
        per_step_cap = max(sub, _round_up(pl.cdiv(folded_rows, min_steps), sub))
        tile_rows = min(tile_rows, per_step_cap)

    grid = (pl.cdiv(folded_rows, tile_rows),)

    per_step_bytes = tile_rows * step_row_bytes
    vmem_bytes = int(min(48 * 1024 * 1024,              # headroom on v7x 64 MiB
                         max(16 * 1024 * 1024, 3 * per_step_bytes)))

    out2d = pl.pallas_call(
        _make_interleave_kernel(d, yd, fold),
        out_shape=jax.ShapeDtypeStruct((folded_rows, fold * 2 * d), out_dtype),
        grid=grid,
        in_specs=[
            pl.BlockSpec((tile_rows, fold * d), lambda i: (i, 0)),
            pl.BlockSpec((tile_rows, fold * yd), lambda i: (i, 0)),
        ],
        out_specs=pl.BlockSpec((tile_rows, fold * 2 * d), lambda i: (i, 0)),
        compiler_params=pltpu.CompilerParams(
            dimension_semantics=("parallel",),
            vmem_limit_bytes=vmem_bytes,
        ),
        cost_estimate=pl.CostEstimate(
            flops=0, transcendentals=0,
            bytes_accessed=int(rows * (d + yd + 2 * d) * itemsize)),
    )(xs2d, ys2d)

    # Free view: (rows/fold, fold*2*d) -> (B, 2*S, D); identical memory order
    # to torch.stack((xs, ys_wide), dim=2).view(bsize, 2*points, x_dim).
    return out2d.reshape(b, 2 * s, d)


class TrainableModelPallas:
    """JAX/Pallas mirror of TrainableModel (abstract base; no parameters)."""

    def __init__(self, x_dim: int, y_dim: int = 1):
        self.x_dim = x_dim
        self.y_dim = y_dim
        self.context_length = None
        self.name = "Unknown_ContextModel"

    def get_dims(self, xs, ys):
        xb, xs_len, xd = xs.shape
        yb, ys_len, yd = ys.shape
        assert xb == yb and xs_len in (ys_len, ys_len + 1)
        assert xd == self.x_dim and yd == self.y_dim and xd >= yd
        return xb, xs_len, (xd, yd)

    def interleave(self, xs, ys):
        self.get_dims(xs, ys)
        assert xs.shape[1] == ys.shape[1]
        return interleave_pallas(xs, ys)

    # TODO(synk): forward()/evaluate() are abstract in the PyTorch source
    # (raise NotImplementedError); no concrete forward compute to translate.
    def forward(self, xs, ys):
        raise NotImplementedError(
            "Abstract TrainableModel does not implement .forward()!"
        )

    def evaluate(self, xs, ys):
        return self.forward(xs, ys)


if __name__ == "__main__":
    def ref_interleave(xs, ys):
        b, s, d = xs.shape
        yd = ys.shape[-1]
        dt = jnp.result_type(xs.dtype, ys.dtype)
        ys_wide = jnp.concatenate(
            [ys.astype(dt), jnp.zeros((b, s, d - yd), dtype=dt)], axis=-1)
        return jnp.stack([xs.astype(dt), ys_wide], axis=2).reshape(b, 2 * s, d)

    k1, k2, k3, k4, k5, k6 = jax.random.split(jax.random.PRNGKey(0), 6)

    # 1) Primary small shape, forced through the Pallas kernel (fold=4 path).
    B, S, X_DIM, Y_DIM = 2, 8, 32, 1
    xs = jax.random.normal(k1, (B, S, X_DIM), dtype=jnp.float32)
    ys = jax.random.normal(k2, (B, S, Y_DIM), dtype=jnp.float32)
    zs = jax.block_until_ready(interleave_pallas(xs, ys, force_pallas=True))
    ref = ref_interleave(xs, ys)
    assert zs.shape == (B, 2 * S, X_DIM), zs.shape
    assert zs.dtype == ref.dtype, (zs.dtype, ref.dtype)
    assert jnp.allclose(zs, ref), "mismatch vs reference interleave (pallas)"

    # 2) Module wrapper path (tiny problem -> fused-XLA fallback).
    model = TrainableModelPallas(x_dim=X_DIM, y_dim=Y_DIM)
    zs2 = jax.block_until_ready(model.interleave(xs, ys))
    assert jnp.allclose(zs2, ref), "mismatch vs reference interleave (fallback)"

    # 3) Larger, multi-step, row-folded, ragged-last-block Pallas path.
    B2, S2, D2 = 1, 33000, 32
    xs2 = jax.random.normal(k3, (B2, S2, D2), dtype=jnp.float32)
    ys2 = jax.random.normal(k4, (B2, S2, 1), dtype=jnp.float32)
    out2 = jax.block_until_ready(interleave_pallas(xs2, ys2))
    assert jnp.allclose(out2, ref_interleave(xs2, ys2)), "mismatch (large)"

    # 4) Shape that cannot fold cleanly (fold=1, narrow-slab path, y_dim>1).
    B3, S3, D3, YD3 = 3, 7, 20, 3
    xs3 = jax.random.normal(k5, (B3, S3, D3), dtype=jnp.float32)
    ys3 = jax.random.normal(k6, (B3, S3, YD3), dtype=jnp.float32)
    out3 = jax.block_until_ready(interleave_pallas(xs3, ys3, force_pallas=True))
    assert jnp.allclose(out3, ref_interleave(xs3, ys3)), "mismatch (no-fold)"

    print("KERNEL_OK")
</pallas_src>

<mosaic_0001>
module attributes {stable_mosaic.version = 11 : i64} {
  func.func @kernel(%arg0: i32, %arg1: memref<4x128xf32, #tpu.memory_space<vmem>>, %arg2: memref<4x4xf32, #tpu.memory_space<vmem>>, %arg3: memref<4x256xf32, #tpu.memory_space<vmem>>) attributes {dimension_semantics = [#tpu.dimension_semantics<parallel>], iteration_bounds = array<i64: 1>, scalar_prefetch = 0 : i64, scratch_operands = 0 : i64, tpu.core_type = #tpu.core_type<tc>, window_params = [{transform_indices = @transform_0, window_bounds = array<i64: 4, 128>}, {transform_indices = @transform_1, window_bounds = array<i64: 4, 4>}, {transform_indices = @transform_2, window_bounds = array<i64: 4, 256>}]} {
    %0 = tpu.iota {dimensions = array<i32: 1>} : vector<4x32xi32>
    %c0_i32 = arith.constant 0 : i32
    %1 = vector.broadcast %c0_i32 : i32 to vector<4x32xi32>
    %2 = arith.cmpi eq, %0, %1 : vector<4x32xi32>
    %cst = arith.constant 0.000000e+00 : f32
    %3 = vector.broadcast %cst : f32 to vector<4x32xf32>
    %c0 = arith.constant 0 : index
    %c0_0 = arith.constant 0 : index
    %4 = vector.load %arg1[%c0, %c0_0] : memref<4x128xf32, #tpu.memory_space<vmem>>, vector<4x32xf32>
    %c0_1 = arith.constant 0 : index
    %c0_2 = arith.constant 0 : index
    %5 = vector.load %arg3[%c0_1, %c0_2] : memref<4x256xf32, #tpu.memory_space<vmem>>, vector<4x32xf32>
    tpu.vector_store %arg3[%c0_1, %c0_2], %4 {strides = array<i32>} : memref<4x256xf32, #tpu.memory_space<vmem>>, vector<4x32xf32>,
    %c0_3 = arith.constant 0 : index
    %c0_4 = arith.constant 0 : index
    %6 = vector.load %arg2[%c0_3, %c0_4] : memref<4x4xf32, #tpu.memory_space<vmem>>, vector<4x1xf32>
    %7 = vector.shape_cast %6 : vector<4x1xf32> to vector<4x1xf32>
    %8 = vector.broadcast %7 : vector<4x1xf32> to vector<4x32xf32>
    %9 = arith.select %2, %8, %3 : vector<4x32xi1>, vector<4x32xf32>
    %c0_5 = arith.constant 0 : index
    %c32 = arith.constant 32 : index
    %10 = vector.load %arg3[%c0_5, %c32] : memref<4x256xf32, #tpu.memory_space<vmem>>, vector<4x32xf32>
    tpu.vector_store %arg3[%c0_5, %c32], %9 {strides = array<i32>} : memref<4x256xf32, #tpu.memory_space<vmem>>, vector<4x32xf32>,
    %c0_6 = arith.constant 0 : index
    %c32_7 = arith.constant 32 : index
    %11 = vector.load %arg1[%c0_6, %c32_7] : memref<4x128xf32, #tpu.memory_space<vmem>>, vector<4x32xf32>
    %c0_8 = arith.constant 0 : index
    %c64 = arith.constant 64 : index
    %12 = vector.load %arg3[%c0_8, %c64] : memref<4x256xf32, #tpu.memory_space<vmem>>, vector<4x32xf32>
    tpu.vector_store %arg3[%c0_8, %c64], %11 {strides = array<i32>} : memref<4x256xf32, #tpu.memory_space<vmem>>, vector<4x32xf32>,
    %c0_9 = arith.constant 0 : index
    %c1 = arith.constant 1 : index
    %13 = vector.load %arg2[%c0_9, %c1] : memref<4x4xf32, #tpu.memory_space<vmem>>, vector<4x1xf32>
    %14 = vector.shape_cast %13 : vector<4x1xf32> to vector<4x1xf32>
    %15 = vector.broadcast %14 : vector<4x1xf32> to vector<4x32xf32>
    %16 = arith.select %2, %15, %3 : vector<4x32xi1>, vector<4x32xf32>
    %c0_10 = arith.constant 0 : index
    %c96 = arith.constant 96 : index
    %17 = vector.load %arg3[%c0_10, %c96] : memref<4x256xf32, #tpu.memory_space<vmem>>, vector<4x32xf32>
    tpu.vector_store %arg3[%c0_10, %c96], %16 {strides = array<i32>} : memref<4x256xf32, #tpu.memory_space<vmem>>, vector<4x32xf32>,
    %c0_11 = arith.constant 0 : index
    %c64_12 = arith.constant 64 : index
    %18 = vector.load %arg1[%c0_11, %c64_12] : memref<4x128xf32, #tpu.memory_space<vmem>>, vector<4x32xf32>
    %c0_13 = arith.constant 0 : index
    %c128 = arith.constant 128 : index
    %19 = vector.load %arg3[%c0_13, %c128] : memref<4x256xf32, #tpu.memory_space<vmem>>, vector<4x32xf32>
    tpu.vector_store %arg3[%c0_13, %c128], %18 {strides = array<i32>} : memref<4x256xf32, #tpu.memory_space<vmem>>, vector<4x32xf32>,
    %c0_14 = arith.constant 0 : index
    %c2 = arith.constant 2 : index
    %20 = vector.load %arg2[%c0_14, %c2] : memref<4x4xf32, #tpu.memory_space<vmem>>, vector<4x1xf32>
    %21 = vector.shape_cast %20 : vector<4x1xf32> to vector<4x1xf32>
    %22 = vector.broadcast %21 : vector<4x1xf32> to vector<4x32xf32>
    %23 = arith.select %2, %22, %3 : vector<4x32xi1>, vector<4x32xf32>
    %c0_15 = arith.constant 0 : index
    %c160 = arith.constant 160 : index
    %24 = vector.load %arg3[%c0_15, %c160] : memref<4x256xf32, #tpu.memory_space<vmem>>, vector<4x32xf32>
    tpu.vector_store %arg3[%c0_15, %c160], %23 {strides = array<i32>} : memref<4x256xf32, #tpu.memory_space<vmem>>, vector<4x32xf32>,
    %c0_16 = arith.constant 0 : index
    %c96_17 = arith.constant 96 : index
    %25 = vector.load %arg1[%c0_16, %c96_17] : memref<4x128xf32, #tpu.memory_space<vmem>>, vector<4x32xf32>
    %c0_18 = arith.constant 0 : index
    %c192 = arith.constant 192 : index
    %26 = vector.load %arg3[%c0_18, %c192] : memref<4x256xf32, #tpu.memory_space<vmem>>, vector<4x32xf32>
    tpu.vector_store %arg3[%c0_18, %c192], %25 {strides = array<i32>} : memref<4x256xf32, #tpu.memory_space<vmem>>, vector<4x32xf32>,
    %c0_19 = arith.constant 0 : index
    %c3 = arith.constant 3 : index
    %27 = vector.load %arg2[%c0_19, %c3] : memref<4x4xf32, #tpu.memory_space<vmem>>, vector<4x1xf32>
    %28 = vector.shape_cast %27 : vector<4x1xf32> to vector<4x1xf32>
    %29 = vector.broadcast %28 : vector<4x1xf32> to vector<4x32xf32>
    %30 = arith.select %2, %29, %3 : vector<4x32xi1>, vector<4x32xf32>
    %c0_20 = arith.constant 0 : index
    %c224 = arith.constant 224 : index
    %31 = vector.load %arg3[%c0_20, %c224] : memref<4x256xf32, #tpu.memory_space<vmem>>, vector<4x32xf32>
    tpu.vector_store %arg3[%c0_20, %c224], %30 {strides = array<i32>} : memref<4x256xf32, #tpu.memory_space<vmem>>, vector<4x32xf32>,
    return
  }
  func.func @transform_0(%arg0: i32) -> (i32, i32) {
    %c0_i32 = arith.constant 0 : i32
    %c0_i32_0 = arith.constant 0 : i32
    return %arg0, %c0_i32 : i32, i32
  }
  func.func @transform_1(%arg0: i32) -> (i32, i32) {
    %c0_i32 = arith.constant 0 : i32
    %c0_i32_0 = arith.constant 0 : i32
    return %arg0, %c0_i32 : i32, i32
  }
  func.func @transform_2(%arg0: i32) -> (i32, i32) {
    %c0_i32 = arith.constant 0 : i32
    %c0_i32_0 = arith.constant 0 : i32
    return %arg0, %c0_i32 : i32, i32
  }
}

</mosaic_0001>

<llo_original>
// kernel: tpu_custom_call.1
$region0: #{tpu_custom_call.1}
  #allocation0 [shape = 'u32[]', space=smem, size = 0x4, offset = 0x4, fixed_abs, tag = 'smem constant byte address 0x4 - core index']
  #allocation1 [shape = 'u32[144,128]{1,0:T(1,128)}', space=vmem, size = 0x12000, scoped, tag = 'internal scratch']
  %s0 = inlined_call_operand.hbm [shape: f32[4,128], index: 0, kind: input, shape index: {}]
  %s1 = inlined_call_operand.hbm [shape: f32[4,4], index: 1, kind: input, shape index: {}]
  %s2 = inlined_call_operand.hbm [shape: f32[4,256], index: 2, kind: output, shape index: {}]
  %s3 = sld [smem:[#allocation0]]
  $region26: #{tpu_custom_call.1} parent=0
    _
  %s5 = ssub.s32 1, %s3
  %s6 = scalar_select 0, %s5, %s3
  $region1: #{tpu_custom_call.1} parent=0
    #allocation2 [shape = 'u8[2048]{0}', space=vmem, size = 0x800, scoped, tag = 'input window, operand 0, single buffered']
    #allocation3 [shape = 's32[1]{0}', space=sflag, size = 0x4, scoped, tag = 'scoped memory for tpu_custom_call.1']
    #allocation4 [shape = 's32[1]{0}', space=sflag, size = 0x4, scoped, tag = 'scoped memory for tpu_custom_call.1']
    #allocation5 [shape = 'u8[2048]{0}', space=vmem, size = 0x800, scoped, tag = 'input window, operand 1, single buffered']
    #allocation6 [shape = 's32[1]{0}', space=sflag, size = 0x4, scoped, tag = 'scoped memory for tpu_custom_call.1']
    #allocation7 [shape = 'u8[4096]{0}', space=vmem, size = 0x1000, scoped, tag = 'output window, operand 0, single buffered']
    %7 = vsyncpa [#allocation3], 0
    %8 = vsyncpa [#allocation6], 0
    %9 = vsyncpa [#allocation4], 0
    // Predicated region
    $region2: #{tpu_custom_call.1} parent=1 // pred_check
      _
    $region3: #{tpu_custom_call.1} parent=1 // pred_check_branch
      %11 = sbr.rel (0) target = $region5
    $region4: #{tpu_custom_call.1} parent=1 // pred_region
      %s13 = ssub.s32 64, 64
      %14 = vsyncadd [#allocation3], %s13
      %s16 = sshll.u32 [#allocation2], 4
      %s17 = int_to_ptr.vmem [resolvable:$true] %s16
      %19 = dma.hbm_to_vmem [thread:$0]  %s0, 64, %s17, [#allocation3]
    $region5: #{tpu_custom_call.1} parent=1 // pred_fallthru
      _
    // Predicated region
    $region6: #{tpu_custom_call.1} parent=1 // pred_check
      _
    $region7: #{tpu_custom_call.1} parent=1 // pred_check_branch
      %21 = sbr.rel (0) target = $region9
    $region8: #{tpu_custom_call.1} parent=1 // pred_region
      %s23 = ssub.s32 64, 64
      %24 = vsyncadd [#allocation6], %s23
      %s26 = sshll.u32 [#allocation5], 4
      %s27 = int_to_ptr.vmem [resolvable:$true] %s26
      %29 = dma.hbm_to_vmem [thread:$0]  %s1, 64, %s27, [#allocation6]
    $region9: #{tpu_custom_call.1} parent=1 // pred_fallthru
      _
    // Predicated region
    $region10: #{tpu_custom_call.1} parent=1 // pred_check
      _
    $region11: #{tpu_custom_call.1} parent=1 // pred_check_branch
      %31 = sbr.rel (0) target = $region13
    $region12: #{tpu_custom_call.1} parent=1 // pred_region
      %32 = dma.done [#allocation3], 64
    $region13: #{tpu_custom_call.1} parent=1 // pred_fallthru
      _
    // Predicated region
    $region14: #{tpu_custom_call.1} parent=1 // pred_check
      _
    $region15: #{tpu_custom_call.1} parent=1 // pred_check_branch
      %34 = sbr.rel (0) target = $region17
    $region16: #{tpu_custom_call.1} parent=1 // pred_region
      %35 = dma.done [#allocation6], 64
    $region17: #{tpu_custom_call.1} parent=1 // pred_fallthru
      _
    %v36 = vlaneseq
    %v37 = vand.u32 %v36, 127
    %vm38 = vcmp.eq.s32.totalorder %v37, 0
    %v39 = vld [vmem:[#allocation2] sm:$0xf]
    %vm40 = vcmask 257024
    %41 = vst.msk [vmem:[#allocation7] sm:$0xf] %vm40, %v39
    %v42 = vld [vmem:[#allocation5] sm:$0xf]
    %44 = vset.pattern.permute.xlu0 0
    %45 = vperm.xlu0 %44, %v42
    %v46 = vpop.permute.xlu0 %45
    %v48 = vsel %vm38, %v46, 0.0
    %50 = vrot.lane.b32.xlu0 %v48, 32
    %v51 = vpop.permute.xlu0 %50
    %vm53 = vcmask 519424
    %54 = vst.msk [vmem:[#allocation7] sm:$0xf] %vm53, %v51
    %v55 = vld [vmem:[#allocation2] sm:$0xf]
    %57 = vrot.lane.b32.xlu0 %v55, 32
    %v58 = vpop.permute.xlu0 %57
    %vm60 = vcmask 781824
    %61 = vst.msk [vmem:[#allocation7] sm:$0xf] %vm60, %v58
    %v62 = vld [vmem:[#allocation5] sm:$0xf]
    %64 = vset.pattern.permute.xlu0 1
    %65 = vperm.xlu0 %64, %v62
    %v66 = vpop.permute.xlu0 %65
    %v68 = vsel %vm38, %v66, 0.0
    %70 = vrot.lane.b32.xlu0 %v68, 96
    %v71 = vpop.permute.xlu0 %70
    %vm73 = vcmask 1044224
    %74 = vst.msk [vmem:[#allocation7] sm:$0xf] %vm73, %v71
    %v75 = vld [vmem:[#allocation2] sm:$0xf]
    %77 = vrot.lane.b32.xlu0 %v75, 64
    %v78 = vpop.permute.xlu0 %77
    %80 = vst.msk [vmem:[#allocation7 + $0x4] sm:$0xf] %vm40, %v78
    %v81 = vld [vmem:[#allocation5] sm:$0xf]
    %83 = vset.pattern.permute.xlu0 2
    %84 = vperm.xlu0 %83, %v81
    %v85 = vpop.permute.xlu0 %84
    %v87 = vsel %vm38, %v85, 0.0
    %89 = vrot.lane.b32.xlu0 %v87, 32
    %v90 = vpop.permute.xlu0 %89
    %92 = vst.msk [vmem:[#allocation7 + $0x4] sm:$0xf] %vm53, %v90
    %v93 = vld [vmem:[#allocation2] sm:$0xf]
    %95 = vrot.lane.b32.xlu0 %v93, 96
    %v96 = vpop.permute.xlu0 %95
    %98 = vst.msk [vmem:[#allocation7 + $0x4] sm:$0xf] %vm60, %v96
    %v99 = vld [vmem:[#allocation5] sm:$0xf]
    %101 = vset.pattern.permute.xlu0 3
    %102 = vperm.xlu0 %101, %v99
    %v103 = vpop.permute.xlu0 %102
    %v105 = vsel %vm38, %v103, 0.0
    %107 = vrot.lane.b32.xlu0 %v105, 96
    %v108 = vpop.permute.xlu0 %107
    %110 = vst.msk [vmem:[#allocation7 + $0x4] sm:$0xf] %vm73, %v108
    // Predicated region
    $region18: #{tpu_custom_call.1} parent=1 // pred_check
      _
    $region19: #{tpu_custom_call.1} parent=1 // pred_check_branch
      %112 = sbr.rel (0) target = $region21
    $region20: #{tpu_custom_call.1} parent=1 // pred_region
      %s114 = ssub.s32 128, 128
      %115 = vsyncadd [#allocation4], %s114
      %s117 = sshll.u32 [#allocation7], 4
      %s118 = int_to_ptr.vmem [resolvable:$true] %s117
      %120 = dma.vmem_to_hbm [thread:$0]  %s118, 128, %s2, [#allocation4]
    $region21: #{tpu_custom_call.1} parent=1 // pred_fallthru
      _
    // Predicated region
    $region22: #{tpu_custom_call.1} parent=1 // pred_check
      _
    $region23: #{tpu_custom_call.1} parent=1 // pred_check_branch
      %122 = sbr.rel (0) target = $region25
    $region24: #{tpu_custom_call.1} parent=1 // pred_region
      %123 = dma.done [#allocation4], 128
    $region25: #{tpu_custom_call.1} parent=1 // pred_fallthru
      _
    %124 = vsyncpa [#allocation3], 1
    %125 = vsyncpa [#allocation6], 1
    %126 = vsyncpa [#allocation4], 1

</llo_original>
